<compile_context>
chip_gen: v7x
topology: tpu7x:2x2x1
jax: 0.10.0
libtpu: 0.0.40
codegen_flags: <defaults>
</compile_context>

<pallas_src>
import functools

import jax
import jax.numpy as jnp
from jax.experimental import pallas as pl
from jax.experimental.pallas import tpu as pltpu


def _round_up(x, m):
    return ((x + m - 1) // m) * m


def rl_net_kernel(x_ref,
                  w1_ref, b1_ref,
                  w2_ref, b2_ref,
                  w3_ref, b3_ref,
                  w4_ref, b4_ref,
                  o_ref):
    """One batch tile: 3x (Linear+ReLU) + Linear + softmax, all in VMEM."""
    cdt = w1_ref.dtype  # compute dtype for MXU operands (bf16 or f32)

    x = x_ref[...]

    # Linear 1 (8 -> 128) + ReLU. Accumulate f32, bias/ReLU in f32.
    h = jnp.dot(x, w1_ref[...], preferred_element_type=jnp.float32) + b1_ref[...]
    h = jnp.maximum(h, 0.0).astype(cdt)

    # Linear 2 (128 -> 16) + ReLU.
    h = jnp.dot(h, w2_ref[...], preferred_element_type=jnp.float32) + b2_ref[...]
    h = jnp.maximum(h, 0.0).astype(cdt)

    # Linear 3 (16 -> 128) + ReLU.
    h = jnp.dot(h, w3_ref[...], preferred_element_type=jnp.float32) + b3_ref[...]
    h = jnp.maximum(h, 0.0).astype(cdt)

    # Linear 4 (128 -> 4), logits in f32.
    logits = (jnp.dot(h, w4_ref[...], preferred_element_type=jnp.float32)
              + b4_ref[...])

    # Numerically-stabilized softmax over the last dim; reciprocal on the EUP.
    m = jnp.max(logits, axis=-1, keepdims=True)
    e = jnp.exp(logits - m)
    denom = jnp.sum(e, axis=-1, keepdims=True)
    o_ref[...] = (e * pl.reciprocal(denom, approx=True)).astype(o_ref.dtype)


@functools.partial(jax.jit, static_argnames=("tb", "compute_dtype"))
def rl_net_forward(state, params, *, tb=512, compute_dtype=jnp.bfloat16):
    """state: [B, 8] float32 -> action probabilities [B, 4] float32."""
    (w1, b1), (w2, b2), (w3, b3), (w4, b4) = params
    B = state.shape[0]

    # Batch tile: multiple of 8 (sublane), capped by tb; pad batch to a multiple.
    tb = min(tb, _round_up(B, 8))
    b_pad = _round_up(B, tb)

    x = state.astype(compute_dtype)
    if b_pad != B:
        x = jnp.pad(x, ((0, b_pad - B), (0, 0)))

    # Matmul operands in compute dtype (bf16 by default); biases stay f32.
    ws = [w.astype(compute_dtype) for w in (w1, w2, w3, w4)]
    bs = [b.astype(jnp.float32) for b in (b1, b2, b3, b4)]

    const_map = lambda i: (0, 0)           # weights/biases: VMEM-resident
    in_specs = [pl.BlockSpec((tb, 8), lambda i: (i, 0))]
    for w, b in zip(ws, bs):
        in_specs.append(pl.BlockSpec(w.shape, const_map))
        in_specs.append(pl.BlockSpec(b.shape, const_map))

    out = pl.pallas_call(
        rl_net_kernel,
        out_shape=jax.ShapeDtypeStruct((b_pad, 4), jnp.float32),
        grid=(b_pad // tb,),
        in_specs=in_specs,
        out_specs=pl.BlockSpec((tb, 4), lambda i: (i, 0)),
        compiler_params=pltpu.CompilerParams(
            dimension_semantics=("parallel",)),
    )(x, ws[0], bs[0], ws[1], bs[1], ws[2], bs[2], ws[3], bs[3])

    return out[:B]


def init_params(key):
    """Deterministic init mimicking PyTorch nn.Linear (uniform +/- 1/sqrt(fan_in)).

    Weights are (in_features, out_features); biases are (1, out_features)."""
    dims = [(8, 128), (128, 16), (16, 128), (128, 4)]
    params = []
    for (fan_in, fan_out) in dims:
        key, kw, kb = jax.random.split(key, 3)
        bound = 1.0 / jnp.sqrt(float(fan_in))
        w = jax.random.uniform(kw, (fan_in, fan_out), jnp.float32, -bound, bound)
        b = jax.random.uniform(kb, (1, fan_out), jnp.float32, -bound, bound)
        params.append((w, b))
    return params


def rl_net_reference(state, params, compute_dtype=jnp.float32):
    """Pure-JAX reference (optionally with the same bf16 matmul operands)."""
    x = state.astype(compute_dtype)
    for i, (w, b) in enumerate(params):
        x = jnp.dot(x.astype(compute_dtype), w.astype(compute_dtype),
                    preferred_element_type=jnp.float32) + b.astype(jnp.float32)
        if i < len(params) - 1:
            x = jnp.maximum(x, 0.0)
    return jax.nn.softmax(x, axis=-1)


if __name__ == "__main__":
    key = jax.random.PRNGKey(0)
    key, kx = jax.random.split(key)

    batch = 8
    state = jax.random.normal(kx, (batch, 8), jnp.float32)
    params = init_params(key)

    out = jax.block_until_ready(rl_net_forward(state, params))

    assert out.shape == (batch, 4)
    # Probabilities sum to ~1 (approx reciprocal introduces tiny slack).
    assert jnp.allclose(jnp.sum(out, axis=-1), 1.0, atol=1e-2)
    # Tight check vs a reference using the same bf16 matmul operands.
    ref_matched = rl_net_reference(state, params, compute_dtype=jnp.bfloat16)
    assert jnp.allclose(out, ref_matched, atol=5e-3, rtol=5e-3)
    # Looser check vs the pure-f32 reference (bf16 operand rounding).
    ref_f32 = rl_net_reference(state, params, compute_dtype=jnp.float32)
    assert jnp.allclose(out, ref_f32, atol=2e-2, rtol=2e-2)

    print("KERNEL_OK")
</pallas_src>

<mosaic_0001>
module attributes {stable_mosaic.version = 11 : i64} {
  func.func @rl_net_kernel(%arg0: i32, %arg1: memref<8x8xbf16, #tpu.memory_space<vmem>>, %arg2: memref<8x128xbf16, #tpu.memory_space<vmem>>, %arg3: memref<1x128xf32, #tpu.memory_space<vmem>>, %arg4: memref<128x16xbf16, #tpu.memory_space<vmem>>, %arg5: memref<1x16xf32, #tpu.memory_space<vmem>>, %arg6: memref<16x128xbf16, #tpu.memory_space<vmem>>, %arg7: memref<1x128xf32, #tpu.memory_space<vmem>>, %arg8: memref<128x4xbf16, #tpu.memory_space<vmem>>, %arg9: memref<1x4xf32, #tpu.memory_space<vmem>>, %arg10: memref<8x4xf32, #tpu.memory_space<vmem>>) attributes {dimension_semantics = [#tpu.dimension_semantics<parallel>], iteration_bounds = array<i64: 1>, scalar_prefetch = 0 : i64, scratch_operands = 0 : i64, tpu.core_type = #tpu.core_type<tc>, window_params = [{transform_indices = @transform_0, window_bounds = array<i64: 8, 8>}, {pipeline_mode = #tpu.pipeline_mode<synchronous>, transform_indices = @transform_1, window_bounds = array<i64: 8, 128>}, {pipeline_mode = #tpu.pipeline_mode<synchronous>, transform_indices = @transform_2, window_bounds = array<i64: 1, 128>}, {pipeline_mode = #tpu.pipeline_mode<synchronous>, transform_indices = @transform_3, window_bounds = array<i64: 128, 16>}, {pipeline_mode = #tpu.pipeline_mode<synchronous>, transform_indices = @transform_4, window_bounds = array<i64: 1, 16>}, {pipeline_mode = #tpu.pipeline_mode<synchronous>, transform_indices = @transform_5, window_bounds = array<i64: 16, 128>}, {pipeline_mode = #tpu.pipeline_mode<synchronous>, transform_indices = @transform_6, window_bounds = array<i64: 1, 128>}, {pipeline_mode = #tpu.pipeline_mode<synchronous>, transform_indices = @transform_7, window_bounds = array<i64: 128, 4>}, {pipeline_mode = #tpu.pipeline_mode<synchronous>, transform_indices = @transform_8, window_bounds = array<i64: 1, 4>}, {transform_indices = @transform_9, window_bounds = array<i64: 8, 4>}]} {
    %c0 = arith.constant 0 : index
    %c0_0 = arith.constant 0 : index
    %0 = vector.load %arg1[%c0, %c0_0] : memref<8x8xbf16, #tpu.memory_space<vmem>>, vector<8x8xbf16>
    %c0_1 = arith.constant 0 : index
    %c0_2 = arith.constant 0 : index
    %1 = vector.load %arg2[%c0_1, %c0_2] : memref<8x128xbf16, #tpu.memory_space<vmem>>, vector<8x128xbf16>
    %cst = arith.constant dense<0.000000e+00> : vector<8x128xf32>
    %2 = tpu.matmul %0, %1, %cst {dimension_numbers = #tpu.dot_dimension_numbers<[1], [0], [0], [1], [0, 0, 1, 1], [], []>} : vector<8x8xbf16>, vector<8x128xbf16>, vector<8x128xf32> -> vector<8x128xf32>
    %c0_3 = arith.constant 0 : index
    %c0_4 = arith.constant 0 : index
    %3 = vector.load %arg3[%c0_3, %c0_4] : memref<1x128xf32, #tpu.memory_space<vmem>>, vector<1x128xf32>
    %4 = vector.broadcast %3 : vector<1x128xf32> to vector<8x128xf32>
    %5 = arith.addf %2, %4 : vector<8x128xf32>
    %cst_5 = arith.constant 0.000000e+00 : f32
    %6 = vector.broadcast %cst_5 : f32 to vector<8x128xf32>
    %7 = arith.maximumf %5, %6 : vector<8x128xf32>
    %8 = arith.truncf %7 : vector<8x128xf32> to vector<8x128xbf16>
    %c0_6 = arith.constant 0 : index
    %c0_7 = arith.constant 0 : index
    %9 = vector.load %arg4[%c0_6, %c0_7] : memref<128x16xbf16, #tpu.memory_space<vmem>>, vector<128x16xbf16>
    %cst_8 = arith.constant dense<0.000000e+00> : vector<8x16xf32>
    %10 = tpu.matmul %8, %9, %cst_8 {dimension_numbers = #tpu.dot_dimension_numbers<[1], [0], [0], [1], [0, 0, 1, 1], [], []>} : vector<8x128xbf16>, vector<128x16xbf16>, vector<8x16xf32> -> vector<8x16xf32>
    %c0_9 = arith.constant 0 : index
    %c0_10 = arith.constant 0 : index
    %11 = vector.load %arg5[%c0_9, %c0_10] : memref<1x16xf32, #tpu.memory_space<vmem>>, vector<1x16xf32>
    %12 = vector.broadcast %11 : vector<1x16xf32> to vector<8x16xf32>
    %13 = arith.addf %10, %12 : vector<8x16xf32>
    %cst_11 = arith.constant 0.000000e+00 : f32
    %14 = vector.broadcast %cst_11 : f32 to vector<8x16xf32>
    %15 = arith.maximumf %13, %14 : vector<8x16xf32>
    %16 = arith.truncf %15 : vector<8x16xf32> to vector<8x16xbf16>
    %c0_12 = arith.constant 0 : index
    %c0_13 = arith.constant 0 : index
    %17 = vector.load %arg6[%c0_12, %c0_13] : memref<16x128xbf16, #tpu.memory_space<vmem>>, vector<16x128xbf16>
    %cst_14 = arith.constant dense<0.000000e+00> : vector<8x128xf32>
    %18 = tpu.matmul %16, %17, %cst_14 {dimension_numbers = #tpu.dot_dimension_numbers<[1], [0], [0], [1], [0, 0, 1, 1], [], []>} : vector<8x16xbf16>, vector<16x128xbf16>, vector<8x128xf32> -> vector<8x128xf32>
    %c0_15 = arith.constant 0 : index
    %c0_16 = arith.constant 0 : index
    %19 = vector.load %arg7[%c0_15, %c0_16] : memref<1x128xf32, #tpu.memory_space<vmem>>, vector<1x128xf32>
    %20 = vector.broadcast %19 : vector<1x128xf32> to vector<8x128xf32>
    %21 = arith.addf %18, %20 : vector<8x128xf32>
    %cst_17 = arith.constant 0.000000e+00 : f32
    %22 = vector.broadcast %cst_17 : f32 to vector<8x128xf32>
    %23 = arith.maximumf %21, %22 : vector<8x128xf32>
    %24 = arith.truncf %23 : vector<8x128xf32> to vector<8x128xbf16>
    %c0_18 = arith.constant 0 : index
    %c0_19 = arith.constant 0 : index
    %25 = vector.load %arg8[%c0_18, %c0_19] : memref<128x4xbf16, #tpu.memory_space<vmem>>, vector<128x4xbf16>
    %cst_20 = arith.constant dense<0.000000e+00> : vector<8x4xf32>
    %26 = tpu.matmul %24, %25, %cst_20 {dimension_numbers = #tpu.dot_dimension_numbers<[1], [0], [0], [1], [0, 0, 1, 1], [], []>} : vector<8x128xbf16>, vector<128x4xbf16>, vector<8x4xf32> -> vector<8x4xf32>
    %c0_21 = arith.constant 0 : index
    %c0_22 = arith.constant 0 : index
    %27 = vector.load %arg9[%c0_21, %c0_22] : memref<1x4xf32, #tpu.memory_space<vmem>>, vector<1x4xf32>
    %28 = vector.broadcast %27 : vector<1x4xf32> to vector<8x4xf32>
    %29 = arith.addf %26, %28 : vector<8x4xf32>
    %cst_23 = arith.constant dense<0xFF800000> : vector<8xf32>
    %30 = vector.multi_reduction <maximumf>, %29, %cst_23 [1] : vector<8x4xf32> to vector<8xf32>
    %31 = vector.shape_cast %30 : vector<8xf32> to vector<8x1xf32>
    %32 = vector.broadcast %31 : vector<8x1xf32> to vector<8x4xf32>
    %33 = arith.subf %29, %32 : vector<8x4xf32>
    %34 = math.exp %33 : vector<8x4xf32>
    %cst_24 = arith.constant dense<0.000000e+00> : vector<8xf32>
    %35 = vector.multi_reduction <add>, %34, %cst_24 [1] : vector<8x4xf32> to vector<8xf32>
    %36 = vector.shape_cast %35 : vector<8xf32> to vector<8x1xf32>
    %37 = tpu.reciprocal %36 {approx = true} : vector<8x1xf32> -> vector<8x1xf32>
    %38 = vector.broadcast %37 : vector<8x1xf32> to vector<8x4xf32>
    %39 = arith.mulf %34, %38 : vector<8x4xf32>
    %c0_25 = arith.constant 0 : index
    %c0_26 = arith.constant 0 : index
    %40 = vector.load %arg10[%c0_25, %c0_26] : memref<8x4xf32, #tpu.memory_space<vmem>>, vector<8x4xf32>
    tpu.vector_store %arg10[%c0_25, %c0_26], %39 {strides = array<i32>} : memref<8x4xf32, #tpu.memory_space<vmem>>, vector<8x4xf32>,
    return
  }
  func.func @transform_0(%arg0: i32) -> (i32, i32) {
    %c0_i32 = arith.constant 0 : i32
    %c0_i32_0 = arith.constant 0 : i32
    return %arg0, %c0_i32 : i32, i32
  }
  func.func @transform_1(%arg0: i32) -> (i32, i32) {
    %c0_i32 = arith.constant 0 : i32
    %c0_i32_0 = arith.constant 0 : i32
    %c0_i32_1 = arith.constant 0 : i32
    return %c0_i32, %c0_i32_0 : i32, i32
  }
  func.func @transform_2(%arg0: i32) -> (i32, i32) {
    %c0_i32 = arith.constant 0 : i32
    %c0_i32_0 = arith.constant 0 : i32
    %c0_i32_1 = arith.constant 0 : i32
    return %c0_i32, %c0_i32_0 : i32, i32
  }
  func.func @transform_3(%arg0: i32) -> (i32, i32) {
    %c0_i32 = arith.constant 0 : i32
    %c0_i32_0 = arith.constant 0 : i32
    %c0_i32_1 = arith.constant 0 : i32
    return %c0_i32, %c0_i32_0 : i32, i32
  }
  func.func @transform_4(%arg0: i32) -> (i32, i32) {
    %c0_i32 = arith.constant 0 : i32
    %c0_i32_0 = arith.constant 0 : i32
    %c0_i32_1 = arith.constant 0 : i32
    return %c0_i32, %c0_i32_0 : i32, i32
  }
  func.func @transform_5(%arg0: i32) -> (i32, i32) {
    %c0_i32 = arith.constant 0 : i32
    %c0_i32_0 = arith.constant 0 : i32
    %c0_i32_1 = arith.constant 0 : i32
    return %c0_i32, %c0_i32_0 : i32, i32
  }
  func.func @transform_6(%arg0: i32) -> (i32, i32) {
    %c0_i32 = arith.constant 0 : i32
    %c0_i32_0 = arith.constant 0 : i32
    %c0_i32_1 = arith.constant 0 : i32
    return %c0_i32, %c0_i32_0 : i32, i32
  }
  func.func @transform_7(%arg0: i32) -> (i32, i32) {
    %c0_i32 = arith.constant 0 : i32
    %c0_i32_0 = arith.constant 0 : i32
    %c0_i32_1 = arith.constant 0 : i32
    return %c0_i32, %c0_i32_0 : i32, i32
  }
  func.func @transform_8(%arg0: i32) -> (i32, i32) {
    %c0_i32 = arith.constant 0 : i32
    %c0_i32_0 = arith.constant 0 : i32
    %c0_i32_1 = arith.constant 0 : i32
    return %c0_i32, %c0_i32_0 : i32, i32
  }
  func.func @transform_9(%arg0: i32) -> (i32, i32) {
    %c0_i32 = arith.constant 0 : i32
    %c0_i32_0 = arith.constant 0 : i32
    return %arg0, %c0_i32 : i32, i32
  }
}

</mosaic_0001>

<llo_original>
// kernel: rl_net_forward.1
$region0: #{rl_net_forward.1}
  #allocation0 [shape = 'u32[]', space=smem, size = 0x4, offset = 0x4, fixed_abs, tag = 'smem constant byte address 0x4 - core index']
  #allocation1 [shape = 'u32[144,128]{1,0:T(1,128)}', space=vmem, size = 0x12000, scoped, tag = 'internal scratch']
  %s0 = inlined_call_operand.vmem [shape: bf16[8,8], index: 0, kind: input, shape index: {}]
  %s1 = inlined_call_operand.vmem [shape: bf16[8,128], index: 1, kind: input, shape index: {}]
  %s2 = inlined_call_operand.vmem [shape: f32[1,128], index: 2, kind: input, shape index: {}]
  %s3 = inlined_call_operand.vmem [shape: bf16[128,16], index: 3, kind: input, shape index: {}]
  %s4 = inlined_call_operand.vmem [shape: f32[1,16], index: 4, kind: input, shape index: {}]
  %s5 = inlined_call_operand.vmem [shape: bf16[16,128], index: 5, kind: input, shape index: {}]
  %s6 = inlined_call_operand.vmem [shape: f32[1,128], index: 6, kind: input, shape index: {}]
  %s7 = inlined_call_operand.vmem [shape: bf16[128,4], index: 7, kind: input, shape index: {}]
  %s8 = inlined_call_operand.vmem [shape: f32[1,4], index: 8, kind: input, shape index: {}]
  %s9 = inlined_call_operand.vmem [shape: f32[8,4], index: 9, kind: output, shape index: {}]
  %s10 = sld [smem:[#allocation0]]
  $region46: #{rl_net_forward.1} parent=0
    _
  %s12 = ssub.s32 1, %s10
  %s13 = scalar_select 0, %s12, %s10
  // Predicated region
  $region2: #{rl_net_forward.1} parent=0 // pred_check
    _
  $region3: #{rl_net_forward.1} parent=0 // pred_check_branch
    %15 = sbr.rel (0) target = $region5
  $region4: #{rl_net_forward.1} parent=0 // pred_region
    _
  $region5: #{rl_net_forward.1} parent=0 // pred_fallthru
    _
  // Predicated region
  $region6: #{rl_net_forward.1} parent=0 // pred_check
    _
  $region7: #{rl_net_forward.1} parent=0 // pred_check_branch
    %17 = sbr.rel (0) target = $region9
  $region8: #{rl_net_forward.1} parent=0 // pred_region
    _
  $region9: #{rl_net_forward.1} parent=0 // pred_fallthru
    _
  // Predicated region
  $region10: #{rl_net_forward.1} parent=0 // pred_check
    _
  $region11: #{rl_net_forward.1} parent=0 // pred_check_branch
    %19 = sbr.rel (0) target = $region13
  $region12: #{rl_net_forward.1} parent=0 // pred_region
    _
  $region13: #{rl_net_forward.1} parent=0 // pred_fallthru
    _
  // Predicated region
  $region14: #{rl_net_forward.1} parent=0 // pred_check
    _
  $region15: #{rl_net_forward.1} parent=0 // pred_check_branch
    %21 = sbr.rel (0) target = $region17
  $region16: #{rl_net_forward.1} parent=0 // pred_region
    _
  $region17: #{rl_net_forward.1} parent=0 // pred_fallthru
    _
  // Predicated region
  $region18: #{rl_net_forward.1} parent=0 // pred_check
    _
  $region19: #{rl_net_forward.1} parent=0 // pred_check_branch
    %23 = sbr.rel (0) target = $region21
  $region20: #{rl_net_forward.1} parent=0 // pred_region
    _
  $region21: #{rl_net_forward.1} parent=0 // pred_fallthru
    _
  // Predicated region
  $region22: #{rl_net_forward.1} parent=0 // pred_check
    _
  $region23: #{rl_net_forward.1} parent=0 // pred_check_branch
    %25 = sbr.rel (0) target = $region25
  $region24: #{rl_net_forward.1} parent=0 // pred_region
    _
  $region25: #{rl_net_forward.1} parent=0 // pred_fallthru
    _
  // Predicated region
  $region26: #{rl_net_forward.1} parent=0 // pred_check
    _
  $region27: #{rl_net_forward.1} parent=0 // pred_check_branch
    %27 = sbr.rel (0) target = $region29
  $region28: #{rl_net_forward.1} parent=0 // pred_region
    _
  $region29: #{rl_net_forward.1} parent=0 // pred_fallthru
    _
  // Predicated region
  $region30: #{rl_net_forward.1} parent=0 // pred_check
    _
  $region31: #{rl_net_forward.1} parent=0 // pred_check_branch
    %29 = sbr.rel (0) target = $region33
  $region32: #{rl_net_forward.1} parent=0 // pred_region
    _
  $region33: #{rl_net_forward.1} parent=0 // pred_fallthru
    _
  // Predicated region
  $region34: #{rl_net_forward.1} parent=0 // pred_check
    _
  $region35: #{rl_net_forward.1} parent=0 // pred_check_branch
    %31 = sbr.rel (0) target = $region37
  $region36: #{rl_net_forward.1} parent=0 // pred_region
    _
  $region37: #{rl_net_forward.1} parent=0 // pred_fallthru
    _
  %v33 = vld [vmem:[%s0] sm:$0xf]
  %v34 = vld [vmem:[%s1] sm:$0xf]
  %v35 = vld [vmem:[%s2] sm:$0x1]
  %v37 = vlaneseq
  %v38 = vshrl.u32 %v37, 7
  %v39 = vsub.s32 0, %v38
  %v40 = vrot.slane %v35, %v39
  %vm42 = vcmask 64512
  %v44 = vsel %vm42, %v33, 0
  %vm46 = vcmask 1043456
  %v48 = vsel %vm46, %v34, 0
  %50 = vmatprep.subr.bf16.mxu0 0
  %51 = vmatpush1.bf16.msra.mxu0 %v48
  %52 = vmatprep.subr.bf16.mxu0 0
  %53 = vmatpush1.bf16.msra.mxu0 0
  %54 = vmatprep.subr.bf16.mxu0 0
  %55 = vmatpush1.bf16.msra.mxu0 0
  %56 = vmatprep.subr.bf16.mxu0 0
  %57 = vmatpush1.bf16.msra.mxu0 0
  %58 = vmatprep.subr.bf16.mxu0 0
  %59 = vmatpush1.bf16.msra.mxu0 0
  %60 = vmatprep.subr.bf16.mxu0 0
  %61 = vmatpush1.bf16.msra.mxu0 0
  %62 = vmatprep.subr.bf16.mxu0 0
  %63 = vmatpush1.bf16.msra.mxu0 0
  %64 = vmatprep.subr.bf16.mxu0 0
  %65 = vmatpush1.bf16.msra.mxu0 0
  %66 = vmatprep.subr.bf16.mxu0 0
  %67 = vmatpush1.bf16.msra.mxu0 0
  %68 = vmatprep.subr.bf16.mxu0 0
  %69 = vmatpush1.bf16.msra.mxu0 0
  %70 = vmatprep.subr.bf16.mxu0 0
  %71 = vmatpush1.bf16.msra.mxu0 0
  %72 = vmatprep.subr.bf16.mxu0 0
  %73 = vmatpush1.bf16.msra.mxu0 0
  %74 = vmatprep.subr.bf16.mxu0 0
  %75 = vmatpush1.bf16.msra.mxu0 0
  %76 = vmatprep.subr.bf16.mxu0 0
  %77 = vmatpush1.bf16.msra.mxu0 0
  %78 = vmatprep.subr.bf16.mxu0 0
  %79 = vmatpush1.bf16.msra.mxu0 0
  %80 = vmatprep.subr.bf16.mxu0 0
  %81 = vmatpush1.bf16.msra.mxu0 0
  %82 = vmatprep.mubr.bf16.mxu0 0
  %83 = vmatmul.mubr.bf16.gmra.mrb[0].mxu0 %v44
  %v84 = vpop.f32.mrb[0].mxu0
  %v85 = vadd.f32 %v40, %v84
  %v86 = vpop.f32.mrb[0].mxu0
  %v87 = vpop.f32.mrb[0].mxu0
  %v88 = vpop.f32.mrb[0].mxu0
  %89 = vdwg.mxu0
  %v90 = vmax.f32 %v85, 0.0
  %v91 = vpack.c.bf16 %v90, %v90
  %v92 = vld [vmem:[%s3] sm:$0xf]
  %v93 = vld [vmem:[%s3 + $0x4] sm:$0xf]
  %v94 = vld [vmem:[%s3 + $0x8] sm:$0xf]
  %v95 = vld [vmem:[%s3 + $0xc] sm:$0xf]
  %v96 = vld [vmem:[%s3 + $0x10] sm:$0xf]
  %v97 = vld [vmem:[%s3 + $0x14] sm:$0xf]
  %v98 = vld [vmem:[%s3 + $0x18] sm:$0xf]
  %v99 = vld [vmem:[%s3 + $0x1c] sm:$0xf]
  %v100 = vld [vmem:[%s3 + $0x20] sm:$0xf]
  %v101 = vld [vmem:[%s3 + $0x24] sm:$0xf]
  %v102 = vld [vmem:[%s3 + $0x28] sm:$0xf]
  %v103 = vld [vmem:[%s3 + $0x2c] sm:$0xf]
  %v104 = vld [vmem:[%s3 + $0x30] sm:$0xf]
  %v105 = vld [vmem:[%s3 + $0x34] sm:$0xf]
  %v106 = vld [vmem:[%s3 + $0x38] sm:$0xf]
  %v107 = vld [vmem:[%s3 + $0x3c] sm:$0xf]
  %v108 = vld [vmem:[%s4] sm:$0x1]
  %v110 = vlaneseq
  %v111 = vshrl.u32 %v110, 7
  %v112 = vsub.s32 0, %v111
  %v113 = vrot.slane %v108, %v112
  %v131 = vunpack.c.l.b16 %v92
  %v132 = vunpack.c.l.b16 %v93
  %v133 = vunpack.c.l.b16 %v94
  %v134 = vunpack.c.l.b16 %v95
  %v135 = vunpack.c.l.b16 %v96
  %v136 = vunpack.c.l.b16 %v97
  %v137 = vunpack.c.l.b16 %v98
  %v138 = vunpack.c.l.b16 %v99
  %v139 = vunpack.c.l.b16 %v100
  %v140 = vunpack.c.l.b16 %v101
  %v141 = vunpack.c.l.b16 %v102
  %v142 = vunpack.c.l.b16 %v103
  %v143 = vunpack.c.l.b16 %v104
  %v144 = vunpack.c.l.b16 %v105
  %v145 = vunpack.c.l.b16 %v106
  %v146 = vunpack.c.l.b16 %v107
  %v147 = vpack.c.b16 %v132, %v131
  %v148 = vpack.c.b16 %v134, %v133
  %v149 = vpack.c.b16 %v136, %v135
  %v150 = vpack.c.b16 %v138, %v137
  %v151 = vpack.c.b16 %v140, %v139
  %v152 = vpack.c.b16 %v142, %v141
  %v153 = vpack.c.b16 %v144, %v143
  %v154 = vpack.c.b16 %v146, %v145
  %163 = vmatprep.subr.bf16.mxu0 0
  %164 = vmatpush1.bf16.msra.mxu0 %v147
  %165 = vmatprep.subr.bf16.mxu0 0
  %166 = vmatpush1.bf16.msra.mxu0 %v148
  %167 = vmatprep.subr.bf16.mxu0 0
  %168 = vmatpush1.bf16.msra.mxu0 %v149
  %169 = vmatprep.subr.bf16.mxu0 0
  %170 = vmatpush1.bf16.msra.mxu0 %v150
  %171 = vmatprep.subr.bf16.mxu0 0
  %172 = vmatpush1.bf16.msra.mxu0 %v151
  %173 = vmatprep.subr.bf16.mxu0 0
  %174 = vmatpush1.bf16.msra.mxu0 %v152
  %175 = vmatprep.subr.bf16.mxu0 0
  %176 = vmatpush1.bf16.msra.mxu0 %v153
  %177 = vmatprep.subr.bf16.mxu0 0
  %178 = vmatpush1.bf16.msra.mxu0 %v154
  %179 = vmatprep.subr.bf16.mxu0 0
  %180 = vmatpush1.bf16.msra.mxu0 0
  %181 = vmatprep.subr.bf16.mxu0 0
  %182 = vmatpush1.bf16.msra.mxu0 0
  %183 = vmatprep.subr.bf16.mxu0 0
  %184 = vmatpush1.bf16.msra.mxu0 0
  %185 = vmatprep.subr.bf16.mxu0 0
  %186 = vmatpush1.bf16.msra.mxu0 0
  %187 = vmatprep.subr.bf16.mxu0 0
  %188 = vmatpush1.bf16.msra.mxu0 0
  %189 = vmatprep.subr.bf16.mxu0 0
  %190 = vmatpush1.bf16.msra.mxu0 0
  %191 = vmatprep.subr.bf16.mxu0 0
  %192 = vmatpush1.bf16.msra.mxu0 0
  %193 = vmatprep.subr.bf16.mxu0 0
  %194 = vmatpush1.bf16.msra.mxu0 0
  %195 = vmatprep.mubr.bf16.mxu0 0
  %196 = vmatmul.mubr.bf16.gmra.mrb[0].mxu0 %v91
  %v197 = vpop.f32.mrb[0].mxu0
  %v198 = vadd.f32 %v113, %v197
  %v199 = vpop.f32.mrb[0].mxu0
  %v200 = vpop.f32.mrb[0].mxu0
  %v201 = vpop.f32.mrb[0].mxu0
  %202 = vdwg.mxu0
  %v203 = vmax.f32 %v198, 0.0
  %v204 = vpack.c.bf16 %v203, %v203
  %v205 = vld [vmem:[%s5] sm:$0xf]
  %v206 = vld [vmem:[%s5 + $0x4] sm:$0xf]
  %v207 = vld [vmem:[%s6] sm:$0x1]
  %v209 = vlaneseq
  %v210 = vshrl.u32 %v209, 7
  %v211 = vsub.s32 0, %v210
  %v212 = vrot.slane %v207, %v211
  %v216 = vunpack.c.l.b16 %v205
  %v217 = vunpack.c.l.b16 %v206
  %v218 = vpack.c.b16 %v217, %v216
  %vm220 = vcmask 130048
  %v222 = vsel %vm220, %v204, 0
  %224 = vmatprep.subr.bf16.mxu0 0
  %225 = vmatpush1.bf16.msra.mxu0 %v218
  %226 = vmatprep.subr.bf16.mxu0 0
  %227 = vmatpush1.bf16.msra.mxu0 0
  %228 = vmatprep.subr.bf16.mxu0 0
  %229 = vmatpush1.bf16.msra.mxu0 0
  %230 = vmatprep.subr.bf16.mxu0 0
  %231 = vmatpush1.bf16.msra.mxu0 0
  %232 = vmatprep.subr.bf16.mxu0 0
  %233 = vmatpush1.bf16.msra.mxu0 0
  %234 = vmatprep.subr.bf16.mxu0 0
  %235 = vmatpush1.bf16.msra.mxu0 0
  %236 = vmatprep.subr.bf16.mxu0 0
  %237 = vmatpush1.bf16.msra.mxu0 0
  %238 = vmatprep.subr.bf16.mxu0 0
  %239 = vmatpush1.bf16.msra.mxu0 0
  %240 = vmatprep.subr.bf16.mxu0 0
  %241 = vmatpush1.bf16.msra.mxu0 0
  %242 = vmatprep.subr.bf16.mxu0 0
  %243 = vmatpush1.bf16.msra.mxu0 0
  %244 = vmatprep.subr.bf16.mxu0 0
  %245 = vmatpush1.bf16.msra.mxu0 0
  %246 = vmatprep.subr.bf16.mxu0 0
  %247 = vmatpush1.bf16.msra.mxu0 0
  %248 = vmatprep.subr.bf16.mxu0 0
  %249 = vmatpush1.bf16.msra.mxu0 0
  %250 = vmatprep.subr.bf16.mxu0 0
  %251 = vmatpush1.bf16.msra.mxu0 0
  %252 = vmatprep.subr.bf16.mxu0 0
  %253 = vmatpush1.bf16.msra.mxu0 0
  %254 = vmatprep.subr.bf16.mxu0 0
  %255 = vmatpush1.bf16.msra.mxu0 0
  %256 = vmatprep.mubr.bf16.mxu0 0
  %257 = vmatmul.mubr.bf16.gmra.mrb[0].mxu0 %v222
  %v258 = vpop.f32.mrb[0].mxu0
  %v259 = vadd.f32 %v212, %v258
  %v260 = vpop.f32.mrb[0].mxu0
  %v261 = vpop.f32.mrb[0].mxu0
  %v262 = vpop.f32.mrb[0].mxu0
  %263 = vdwg.mxu0
  %v264 = vmax.f32 %v259, 0.0
  %v265 = vpack.c.bf16 %v264, %v264
  %v266 = vld [vmem:[%s7] sm:$0xf]
  %v267 = vld [vmem:[%s7 + $0x4] sm:$0xf]
  %v268 = vld [vmem:[%s7 + $0x8] sm:$0xf]
  %v269 = vld [vmem:[%s7 + $0xc] sm:$0xf]
  %v270 = vld [vmem:[%s7 + $0x10] sm:$0xf]
  %v271 = vld [vmem:[%s7 + $0x14] sm:$0xf]
  %v272 = vld [vmem:[%s7 + $0x18] sm:$0xf]
  %v273 = vld [vmem:[%s7 + $0x1c] sm:$0xf]
  %v274 = vld [vmem:[%s7 + $0x20] sm:$0xf]
  %v275 = vld [vmem:[%s7 + $0x24] sm:$0xf]
  %v276 = vld [vmem:[%s7 + $0x28] sm:$0xf]
  %v277 = vld [vmem:[%s7 + $0x2c] sm:$0xf]
  %v278 = vld [vmem:[%s7 + $0x30] sm:$0xf]
  %v279 = vld [vmem:[%s7 + $0x34] sm:$0xf]
  %v280 = vld [vmem:[%s7 + $0x38] sm:$0xf]
  %v281 = vld [vmem:[%s7 + $0x3c] sm:$0xf]
  %v282 = vld [vmem:[%s8] sm:$0x1]
  %v284 = vlaneseq
  %v285 = vshrl.u32 %v284, 7
  %v286 = vsub.s32 0, %v285
  %v287 = vrot.slane %v282, %v286
  %v305 = vunpack.c.l.b16 %v266
  %v306 = vunpack.c.l.b16 %v267
  %v307 = vunpack.c.l.b16 %v268
  %v308 = vunpack.c.l.b16 %v269
  %v309 = vunpack.c.l.b16 %v270
  %v310 = vunpack.c.l.b16 %v271
  %v311 = vunpack.c.l.b16 %v272
  %v312 = vunpack.c.l.b16 %v273
  %v313 = vunpack.c.l.b16 %v274
  %v314 = vunpack.c.l.b16 %v275
  %v315 = vunpack.c.l.b16 %v276
  %v316 = vunpack.c.l.b16 %v277
  %v317 = vunpack.c.l.b16 %v278
  %v318 = vunpack.c.l.b16 %v279
  %v319 = vunpack.c.l.b16 %v280
  %v320 = vunpack.c.l.b16 %v281
  %v321 = vpack.c.b16 %v306, %v305
  %v322 = vpack.c.b16 %v308, %v307
  %v323 = vpack.c.b16 %v310, %v309
  %v324 = vpack.c.b16 %v312, %v311
  %v325 = vpack.c.b16 %v314, %v313
  %v326 = vpack.c.b16 %v316, %v315
  %v327 = vpack.c.b16 %v318, %v317
  %v328 = vpack.c.b16 %v320, %v319
  %337 = vmatprep.subr.bf16.mxu0 0
  %338 = vmatpush1.bf16.msra.mxu0 %v321
  %339 = vmatprep.subr.bf16.mxu0 0
  %340 = vmatpush1.bf16.msra.mxu0 %v322
  %341 = vmatprep.subr.bf16.mxu0 0
  %342 = vmatpush1.bf16.msra.mxu0 %v323
  %343 = vmatprep.subr.bf16.mxu0 0
  %344 = vmatpush1.bf16.msra.mxu0 %v324
  %345 = vmatprep.subr.bf16.mxu0 0
  %346 = vmatpush1.bf16.msra.mxu0 %v325
  %347 = vmatprep.subr.bf16.mxu0 0
  %348 = vmatpush1.bf16.msra.mxu0 %v326
  %349 = vmatprep.subr.bf16.mxu0 0
  %350 = vmatpush1.bf16.msra.mxu0 %v327
  %351 = vmatprep.subr.bf16.mxu0 0
  %352 = vmatpush1.bf16.msra.mxu0 %v328
  %353 = vmatprep.subr.bf16.mxu0 0
  %354 = vmatpush1.bf16.msra.mxu0 0
  %355 = vmatprep.subr.bf16.mxu0 0
  %356 = vmatpush1.bf16.msra.mxu0 0
  %357 = vmatprep.subr.bf16.mxu0 0
  %358 = vmatpush1.bf16.msra.mxu0 0
  %359 = vmatprep.subr.bf16.mxu0 0
  %360 = vmatpush1.bf16.msra.mxu0 0
  %361 = vmatprep.subr.bf16.mxu0 0
  %362 = vmatpush1.bf16.msra.mxu0 0
  %363 = vmatprep.subr.bf16.mxu0 0
  %364 = vmatpush1.bf16.msra.mxu0 0
  %365 = vmatprep.subr.bf16.mxu0 0
  %366 = vmatpush1.bf16.msra.mxu0 0
  %367 = vmatprep.subr.bf16.mxu0 0
  %368 = vmatpush1.bf16.msra.mxu0 0
  %369 = vmatprep.mubr.bf16.mxu0 0
  %370 = vmatmul.mubr.bf16.gmra.mrb[0].mxu0 %v265
  %v371 = vpop.f32.mrb[0].mxu0
  %v372 = vadd.f32 %v287, %v371
  %v373 = vpop.f32.mrb[0].mxu0
  %v374 = vpop.f32.mrb[0].mxu0
  %v375 = vpop.f32.mrb[0].mxu0
  %376 = vdwg.mxu0
  %vm377 = vcmask 31744
  %v378 = vsel %vm377, %v372, -inf
  %379 = vmax.xlane.f32.xlu0 %v378
  %v380 = vpop.xlane.xlu0 %379
  %v381 = vsub.f32 %v372, %v380
  %v382 = vmul.f32 %v381, 1.442695
  %v383 = vpow.pop %v382
  %v384 = vsel %vm377, %v383, 0.0
  %385 = vadd.xlane.f32.xlu0 %v384
  %v386 = vpop.xlane.xlu0 %385
  %v387 = vrcp.pop %v386
  %v388 = vmul.f32 %v383, %v387
  %389 = vst.msk [vmem:[%s9] sm:$0xff] %vm377, %v388
  // Predicated region
  $region38: #{rl_net_forward.1} parent=0 // pred_check
    _
  $region39: #{rl_net_forward.1} parent=0 // pred_check_branch
    %391 = sbr.rel (0) target = $region41
  $region40: #{rl_net_forward.1} parent=0 // pred_region
    _
  $region41: #{rl_net_forward.1} parent=0 // pred_fallthru
    _
  // Predicated region
  $region42: #{rl_net_forward.1} parent=0 // pred_check
    _
  $region43: #{rl_net_forward.1} parent=0 // pred_check_branch
    %393 = sbr.rel (0) target = $region45
  $region44: #{rl_net_forward.1} parent=0 // pred_region
    _
  $region45: #{rl_net_forward.1} parent=0 // pred_fallthru
    _

</llo_original>
